<compile_context>
chip_gen: v7x
topology: tpu7x:2x2x1
jax: 0.10.0
libtpu: 0.0.40
codegen_flags: <defaults>
</compile_context>

<pallas_src>
import functools

import jax
import jax.numpy as jnp
from jax import lax
from jax.experimental import pallas as pl
from jax.experimental.pallas import tpu as pltpu


def _mlp_kernel(x_ref, w_ref, b_ref, o_ref, *, compute_dtype):
    # x_ref: (C, t_hw) native-dtype channel-major tile (transpose fused here)
    # w_ref: (C, D) [already compute_dtype], b_ref: (1, D) f32, o_ref: (t_hw, D)
    x = x_ref[...]
    if compute_dtype is not None:
        # In-kernel cast: hidden under vld/VALU slack, no extra HBM pass.
        x = x.astype(compute_dtype)
    acc = lax.dot_general(
        x,
        w_ref[...],
        dimension_numbers=(((0,), (0,)), ((), ())),  # contract over C
        preferred_element_type=jnp.float32,
    )
    o_ref[...] = (acc + b_ref[...]).astype(o_ref.dtype)


@functools.partial(
    jax.jit, static_argnames=("hw_tile", "compute_dtype", "out_dtype")
)
def segformer_mlp(x, weight, bias, *, hw_tile=1024,
                  compute_dtype=jnp.bfloat16, out_dtype=None):
    """x: (B, C, H, W); weight: (D, C) [PyTorch layout]; bias: (D,).

    Returns (B, H*W, D), matching SegformerMLP.forward.

    hw_tile:        tokens (H*W positions) per grid step; multiple of 128
                    (clamped to H*W when the image is small).  Keep <= 2048
                    for the largest config on v7x (64 MiB VMEM); up to 4096
                    is fine on v5e/v6e.
    compute_dtype:  dtype for the matmul operands (x cast IN-KERNEL, w cast
                    in the wrapper since it's small); accumulation and bias
                    add stay f32.  None => pure f32 matmul.
    out_dtype:      output dtype; None => x.dtype.  bf16 halves the dominant
                    (B, HW, D) HBM stream when downstream allows.
    """
    assert hw_tile % 128 == 0, "hw_tile must be a multiple of 128"
    B, C, H, W = x.shape
    D = weight.shape[0]
    HW = H * W
    out_dtype = x.dtype if out_dtype is None else jnp.dtype(out_dtype)

    # Free reshape (contiguous) -- no transpose, no cast, no extra HBM pass.
    x3 = x.reshape(B, C, HW)
    w = weight.T                                   # (C, D)
    if compute_dtype is not None:
        w = w.astype(compute_dtype)                # small (C*D), wrapper cast OK
    b = bias.reshape(1, D).astype(jnp.float32)     # f32 bias add in-kernel

    # Tile over the H*W axis; ragged last block is masked by Pallas.
    t_hw = HW if HW <= hw_tile else hw_tile
    # v7x has 2 TensorCores sharing the parallel grid: make sure there are
    # >= 2 independent grid iterations when B == 1 and the image is one tile.
    if B * (-(-HW // t_hw)) < 2 and HW >= 256:
        t_hw = ((-(-HW // 2)) + 127) // 128 * 128
    grid = (B, pl.cdiv(HW, t_hw))

    # VMEM budget: double-buffered x / out tiles + (still double-buffered)
    # grid-resident weights + padded bias, with margin.  Never below the
    # 32 MiB default; capped well under physical VMEM.
    x_it = x3.dtype.itemsize
    w_it = w.dtype.itemsize
    o_it = out_dtype.itemsize
    vmem_needed = (2 * C * t_hw * x_it
                   + 2 * t_hw * D * o_it
                   + 2 * C * D * w_it
                   + 2 * 8 * D * 4)
    vmem_limit = max(32 * 1024 * 1024, int(vmem_needed * 1.25) + (1 << 20))
    vmem_limit = min(vmem_limit, 100 * 1024 * 1024)

    in_bytes = (x3.size * x_it + w.size * w_it + b.size * b.dtype.itemsize)
    out_bytes = B * HW * D * o_it

    kernel = functools.partial(_mlp_kernel, compute_dtype=compute_dtype)

    out = pl.pallas_call(
        kernel,
        out_shape=jax.ShapeDtypeStruct((B, HW, D), out_dtype),
        grid_spec=pltpu.PrefetchScalarGridSpec(
            num_scalar_prefetch=0,
            grid=grid,
            in_specs=[
                # x tile: (1, C, t_hw) squeezed to (C, t_hw); lane-dense on HW.
                pl.BlockSpec((None, C, t_hw), lambda bi, hi: (bi, 0, hi)),
                # weights / bias resident across the whole grid.
                pl.BlockSpec((C, D), lambda bi, hi: (0, 0)),
                pl.BlockSpec((1, D), lambda bi, hi: (0, 0)),
            ],
            out_specs=pl.BlockSpec((None, t_hw, D), lambda bi, hi: (bi, hi, 0)),
        ),
        compiler_params=pltpu.CompilerParams(
            dimension_semantics=("parallel", "parallel"),
            vmem_limit_bytes=vmem_limit,
        ),
        cost_estimate=pl.CostEstimate(
            flops=2 * B * HW * C * D,
            transcendentals=0,
            bytes_accessed=in_bytes + out_bytes,
        ),
    )(x3, w, b)

    return out


if __name__ == "__main__":
    # Small config consistent with the module: C input channels of an NCHW
    # feature map, D = config.decoder_hidden_size (256, the real Segformer
    # default, keeps the output lane-dense).
    B, C, H, W = 2, 4, 16, 16
    D = 256

    key = jax.random.PRNGKey(0)
    kx, kw, kb = jax.random.split(key, 3)

    x = jax.random.normal(kx, (B, C, H, W), dtype=jnp.float32)
    bound = 1.0 / (C ** 0.5)
    weight = jax.random.uniform(kw, (D, C), minval=-bound, maxval=bound,
                                dtype=jnp.float32)
    bias = jax.random.uniform(kb, (D,), minval=-bound, maxval=bound,
                              dtype=jnp.float32)

    # Reference (same math as the PyTorch module).
    ref = jnp.transpose(x.reshape(B, C, H * W), (0, 2, 1)) @ weight.T + bias

    # Pure-f32 path: exact-ish check.
    out = segformer_mlp(x, weight, bias, compute_dtype=None)
    out = jax.block_until_ready(out)
    assert out.shape == (B, H * W, D), out.shape
    assert out.dtype == jnp.float32, out.dtype
    assert jnp.allclose(out, ref, atol=1e-5, rtol=1e-5)

    # Default fast path: in-kernel bf16 operands (f32 accumulate + f32 bias)
    # and bf16 output to halve the dominant (B, HW, D) HBM stream.
    out_bf16 = segformer_mlp(x, weight, bias, compute_dtype=jnp.bfloat16,
                             out_dtype=jnp.bfloat16)
    out_bf16 = jax.block_until_ready(out_bf16)
    assert out_bf16.shape == (B, H * W, D), out_bf16.shape
    assert out_bf16.dtype == jnp.bfloat16, out_bf16.dtype
    assert jnp.allclose(out_bf16.astype(jnp.float32), ref, atol=1e-1, rtol=1e-1)

    print("KERNEL_OK")
</pallas_src>

<mosaic_0001>
module attributes {stable_mosaic.version = 11 : i64} {
  func.func @_mlp_kernel(%arg0: i32, %arg1: i32, %arg2: memref<1x4x256xf32, #tpu.memory_space<vmem>>, %arg3: memref<4x256xf32, #tpu.memory_space<vmem>>, %arg4: memref<1x256xf32, #tpu.memory_space<vmem>>, %arg5: memref<1x256x256xf32, #tpu.memory_space<vmem>>) attributes {dimension_semantics = [#tpu.dimension_semantics<parallel>, #tpu.dimension_semantics<parallel>], iteration_bounds = array<i64: 2, 1>, scalar_prefetch = 0 : i64, scratch_operands = 0 : i64, tpu.core_type = #tpu.core_type<tc>, window_params = [{transform_indices = @transform_0, window_bounds = array<i64: 1, 4, 256>}, {pipeline_mode = #tpu.pipeline_mode<synchronous>, transform_indices = @transform_1, window_bounds = array<i64: 4, 256>}, {pipeline_mode = #tpu.pipeline_mode<synchronous>, transform_indices = @transform_2, window_bounds = array<i64: 1, 256>}, {transform_indices = @transform_3, window_bounds = array<i64: 1, 256, 256>}]} {
    %c0 = arith.constant 0 : index
    %c0_0 = arith.constant 0 : index
    %c0_1 = arith.constant 0 : index
    %0 = vector.load %arg2[%c0, %c0_0, %c0_1] : memref<1x4x256xf32, #tpu.memory_space<vmem>>, vector<1x4x256xf32>
    %1 = vector.shape_cast %0 : vector<1x4x256xf32> to vector<4x256xf32>
    %c0_2 = arith.constant 0 : index
    %c0_3 = arith.constant 0 : index
    %2 = vector.load %arg3[%c0_2, %c0_3] : memref<4x256xf32, #tpu.memory_space<vmem>>, vector<4x256xf32>
    %cst = arith.constant dense<0.000000e+00> : vector<256x256xf32>
    %3 = tpu.matmul %1, %2, %cst {dimension_numbers = #tpu.dot_dimension_numbers<[0], [0], [1], [1], [0, 1, 1, 1], [], []>} : vector<4x256xf32>, vector<4x256xf32>, vector<256x256xf32> -> vector<256x256xf32>
    %c0_4 = arith.constant 0 : index
    %c0_5 = arith.constant 0 : index
    %4 = vector.load %arg4[%c0_4, %c0_5] : memref<1x256xf32, #tpu.memory_space<vmem>>, vector<1x256xf32>
    %5 = vector.broadcast %4 : vector<1x256xf32> to vector<256x256xf32>
    %6 = arith.addf %3, %5 : vector<256x256xf32>
    %c0_6 = arith.constant 0 : index
    %c0_7 = arith.constant 0 : index
    %c0_8 = arith.constant 0 : index
    %7 = vector.load %arg5[%c0_6, %c0_7, %c0_8] : memref<1x256x256xf32, #tpu.memory_space<vmem>>, vector<1x256x256xf32>
    %8 = vector.shape_cast %7 : vector<1x256x256xf32> to vector<256x256xf32>
    %9 = vector.shape_cast %6 : vector<256x256xf32> to vector<1x256x256xf32>
    tpu.vector_store %arg5[%c0_6, %c0_7, %c0_8], %9 {strides = array<i32>} : memref<1x256x256xf32, #tpu.memory_space<vmem>>, vector<1x256x256xf32>,
    return
  }
  func.func @transform_0(%arg0: i32, %arg1: i32) -> (i32, i32, i32) {
    %c0_i32 = arith.constant 0 : i32
    %c0_i32_0 = arith.constant 0 : i32
    return %arg0, %c0_i32, %arg1 : i32, i32, i32
  }
  func.func @transform_1(%arg0: i32, %arg1: i32) -> (i32, i32) {
    %c0_i32 = arith.constant 0 : i32
    %c0_i32_0 = arith.constant 0 : i32
    %c0_i32_1 = arith.constant 0 : i32
    return %c0_i32, %c0_i32_0 : i32, i32
  }
  func.func @transform_2(%arg0: i32, %arg1: i32) -> (i32, i32) {
    %c0_i32 = arith.constant 0 : i32
    %c0_i32_0 = arith.constant 0 : i32
    %c0_i32_1 = arith.constant 0 : i32
    return %c0_i32, %c0_i32_0 : i32, i32
  }
  func.func @transform_3(%arg0: i32, %arg1: i32) -> (i32, i32, i32) {
    %c0_i32 = arith.constant 0 : i32
    %c0_i32_0 = arith.constant 0 : i32
    return %arg0, %arg1, %c0_i32 : i32, i32, i32
  }
}

</mosaic_0001>

<llo_original>
// kernel: segformer_mlp.1
$region0: #{segformer_mlp.1}
  #allocation0 [shape = 'u32[]', space=smem, size = 0x4, offset = 0x4, fixed_abs, tag = 'smem constant byte address 0x4 - core index']
  #allocation1 [shape = 'u32[144,128]{1,0:T(1,128)}', space=vmem, size = 0x12000, scoped, tag = 'internal scratch']
  %s0 = inlined_call_operand.vmem [shape: f32[2,4,256], index: 0, kind: input, shape index: {}]
  %s1 = inlined_call_operand.vmem [shape: f32[4,256], index: 1, kind: input, shape index: {}]
  %s2 = inlined_call_operand.vmem [shape: f32[1,256], index: 2, kind: input, shape index: {}]
  %s3 = inlined_call_operand.hbm [shape: f32[2,256,256], index: 3, kind: output, shape index: {}]
  %s4 = sld [smem:[#allocation0]]
  $region45: #{segformer_mlp.1} parent=0
    _
  %s6 = ssub.s32 1, %s4
  %s7 = scalar_select 0, %s6, %s4
  $region1: #{segformer_mlp.1} parent=0
    #allocation2 [shape = 'u8[524288]{0}', space=vmem, size = 0x80000, scoped, tag = 'output window, operand 0']
    #allocation3 [shape = 's32[2]{0}', space=sflag, size = 0x8, scoped, tag = 'scoped memory for segformer_mlp.1']
    %8 = vsyncpa [#allocation3], 0
    %s9 = scalar_lea.sflag [#allocation3], 1
    %10 = vsyncpa %s9, 0
    loop: start=0, step=1, limit=4
    $region2: #{segformer_mlp.1} parent=1 // loop_pre_header
      _
    $region3: #{segformer_mlp.1} parent=1 // loop_header
      %s12 = sphi 0, %s16
      %p13 = scmp.ge.s32.totalorder %s12, 4
      %s19 = sphi 0, %s31
      %s20 = sphi 0, %s27
      %s21 = sphi 0, %s19
      %s22 = sphi 0, %s20
      %s23 = sphi 0, %s21
      %s24 = sphi 0, %s22
      %s36 = sphi 0, %s38
      %s39 = sphi 0, %s36
      %s40 = sphi 0, %s39
      %s56 = sphi 0, %s40
      %s60 = sphi 0, %s60
      %s62 = sphi 0, %s60
      %s63 = sphi 0, %s62
      %s77 = sphi 0, %s63
      %s81 = sphi 0, %s81
      %s83 = sphi 0, %s81
      %s84 = sphi 0, %s83
      %s98 = sphi 0, %s84
      %s106 = sphi 0, %s108
      %s109 = sphi 0, %s106
      %s110 = sphi 0, %s109
      %s126 = sphi 0, %s110
    $region4: #{segformer_mlp.1} parent=1 // loop_header_branch
      %15 = sbr.rel (%p13) target = $region8
    $region5: #{segformer_mlp.1} parent=1 // loop_body
      %s17 = ssub.s32 %s12, 1
      %s18 = ssub.s32 %s12, 2
      %s25 = sadd.s32 1, %s20
      %p26 = scmp.ge.s32.totalorder %s25, 1
      %s27 = scalar_select %p26, 0, %s25
      %s28 = sadd.s32 1, %s19
      %s29 = scalar_select %p26, %s28, %s19
      %p30 = scmp.ge.s32.totalorder %s29, 2
      %s31 = scalar_select %p30, 0, %s29
      %s32 = ssub.s32 %s19, %s31
      %s33 = ssub.s32 %s20, %s27
      %s34 = sor.u32 %s32, %s33
      %p35 = scmp.eq.s32.totalorder %s34, 0
      %s37 = sadd.s32 %s36, 1
      %s38 = scalar_select %p35, %s36, %s37
      %p41 = pneg %p35
      %p42 = scmp.eq.s32.totalorder %s12, 1
      %p43 = por %p41, %p42
      %p44 = scmp.ne.s32.totalorder %s36, %s39
      %p45 = scmp.eq.s32.totalorder %s12, 0
      %p46 = por %p44, %p45
      %p47 = scmp.ne.s32.totalorder %s36, %s39
      %p48 = scmp.eq.s32.totalorder %s17, 1
      %p49 = por %p47, %p48
      %p50 = scmp.ne.s32.totalorder %s39, %s40
      %p51 = scmp.eq.s32.totalorder %s17, 0
      %p52 = por %p50, %p51
      %p53 = scmp.ne.s32.totalorder %s39, %s40
      %p54 = scmp.eq.s32.totalorder %s18, 1
      %p55 = por %p53, %p54
      %p57 = scmp.ne.s32.totalorder %s40, %s56
      %p58 = scmp.eq.s32.totalorder %s18, 0
      %p59 = por %p57, %p58
      %s61 = sadd.s32 %s60, 1
      %p64 = scmp.eq.s32.totalorder %s12, 1
      %p65 = scmp.ne.s32.totalorder %s60, %s62
      %p66 = scmp.eq.s32.totalorder %s12, 0
      %p67 = por %p65, %p66
      %p68 = scmp.ne.s32.totalorder %s60, %s62
      %p69 = scmp.eq.s32.totalorder %s17, 1
      %p70 = por %p68, %p69
      %p71 = scmp.ne.s32.totalorder %s62, %s63
      %p72 = scmp.eq.s32.totalorder %s17, 0
      %p73 = por %p71, %p72
      %p74 = scmp.ne.s32.totalorder %s62, %s63
      %p75 = scmp.eq.s32.totalorder %s18, 1
      %p76 = por %p74, %p75
      %p78 = scmp.ne.s32.totalorder %s63, %s77
      %p79 = scmp.eq.s32.totalorder %s18, 0
      %p80 = por %p78, %p79
      %s82 = sadd.s32 %s81, 1
      %p85 = scmp.eq.s32.totalorder %s12, 1
      %p86 = scmp.ne.s32.totalorder %s81, %s83
      %p87 = scmp.eq.s32.totalorder %s12, 0
      %p88 = por %p86, %p87
      %p89 = scmp.ne.s32.totalorder %s81, %s83
      %p90 = scmp.eq.s32.totalorder %s17, 1
      %p91 = por %p89, %p90
      %p92 = scmp.ne.s32.totalorder %s83, %s84
      %p93 = scmp.eq.s32.totalorder %s17, 0
      %p94 = por %p92, %p93
      %p95 = scmp.ne.s32.totalorder %s83, %s84
      %p96 = scmp.eq.s32.totalorder %s18, 1
      %p97 = por %p95, %p96
      %p99 = scmp.ne.s32.totalorder %s84, %s98
      %p100 = scmp.eq.s32.totalorder %s18, 0
      %p101 = por %p99, %p100
      %s102 = ssub.s32 %s19, %s31
      %s103 = ssub.s32 %s20, %s27
      %s104 = sor.u32 %s102, %s103
      %p105 = scmp.eq.s32.totalorder %s104, 0
      %s107 = sadd.s32 %s106, 1
      %s108 = scalar_select %p105, %s106, %s107
      %p111 = pneg %p105
      %p112 = scmp.eq.s32.totalorder %s12, 1
      %p113 = por %p111, %p112
      %p114 = scmp.ne.s32.totalorder %s106, %s109
      %p115 = scmp.eq.s32.totalorder %s12, 0
      %p116 = por %p114, %p115
      %p117 = scmp.ne.s32.totalorder %s106, %s109
      %p118 = scmp.eq.s32.totalorder %s17, 1
      %p119 = por %p117, %p118
      %p120 = scmp.ne.s32.totalorder %s109, %s110
      %p121 = scmp.eq.s32.totalorder %s17, 0
      %p122 = por %p120, %p121
      %p123 = scmp.ne.s32.totalorder %s109, %s110
      %p124 = scmp.eq.s32.totalorder %s18, 1
      %p125 = por %p123, %p124
      %p127 = scmp.ne.s32.totalorder %s110, %s126
      %p128 = scmp.eq.s32.totalorder %s18, 0
      %p129 = por %p127, %p128
      %p130 = scmp.le.s32.totalorder 1, %s12
      %p131 = scmp.lt.s32.totalorder %s12, 3
      %p132 = pnand %p130, %p131
      %p133 = pneg %p132
      // Predicated region
      $region9: #{segformer_mlp.1} parent=5 // pred_check
        _
      $region10: #{segformer_mlp.1} parent=5 // pred_check_branch
        %135 = sbr.rel (%p132) target = $region12
      $region11: #{segformer_mlp.1} parent=5 // pred_region
        %s136 = ssub.s32 %s12, 1
        // Predicated region
        $region13: #{segformer_mlp.1} parent=11 // pred_check
          %p137 = pneg %p73
        $region14: #{segformer_mlp.1} parent=11 // pred_check_branch
          %139 = sbr.rel (%p137) target = $region16
        $region15: #{segformer_mlp.1} parent=11 // pred_region
          _
        $region16: #{segformer_mlp.1} parent=11 // pred_fallthru
          _
        // Predicated region
        $region17: #{segformer_mlp.1} parent=11 // pred_check
          %p140 = pneg %p94
        $region18: #{segformer_mlp.1} parent=11 // pred_check_branch
          %142 = sbr.rel (%p140) target = $region20
        $region19: #{segformer_mlp.1} parent=11 // pred_region
          _
        $region20: #{segformer_mlp.1} parent=11 // pred_fallthru
          _
      $region12: #{segformer_mlp.1} parent=5 // pred_fallthru
        _
      %p143 = scmp.lt.s32.totalorder %s12, 2
      // Predicated region
      $region21: #{segformer_mlp.1} parent=5 // pred_check
        %p144 = pneg %p143
      $region22: #{segformer_mlp.1} parent=5 // pred_check_branch
        %146 = sbr.rel (%p144) target = $region24
      $region23: #{segformer_mlp.1} parent=5 // pred_region
        // Predicated region
        $region25: #{segformer_mlp.1} parent=23 // pred_check
          %p147 = pneg %p46
        $region26: #{segformer_mlp.1} parent=23 // pred_check_branch
          %149 = sbr.rel (%p147) target = $region28
        $region27: #{segformer_mlp.1} parent=23 // pred_region
          %s150 = smul.u32 2, %s20
          %p151 = scmp.lt.s32.totalorder %s19, 1
          %s152 = scalar_select %p151, %s19, 1
          %p153 = scmp.lt.s32.totalorder %s150, 1
          %s154 = scalar_select %p153, %s150, 1
          %s155 = smul.addr %s152, 2
          %s156 = sadd.s32 %s154, %s155
          %s157 = smul.addr %s156, 4
          %s158 = scalar_lea.vmem %s0, %s157
          %s159 = smul.u32 2, %s20
        $region28: #{segformer_mlp.1} parent=23 // pred_fallthru
          _
      $region24: #{segformer_mlp.1} parent=5 // pred_fallthru
        _
      %p160 = scmp.le.s32.totalorder 1, %s12
      %p161 = scmp.lt.s32.totalorder %s12, 3
      %p162 = pnand %p160, %p161
      %p163 = pneg %p162
      // Predicated region
      $region29: #{segformer_mlp.1} parent=5 // pred_check
        _
      $region30: #{segformer_mlp.1} parent=5 // pred_check_branch
        %165 = sbr.rel (%p162) target = $region32
      $region31: #{segformer_mlp.1} parent=5 // pred_region
        %s166 = ssub.s32 %s12, 1
        %s167 = smul.u32 2, %s22
        %p168 = scmp.lt.s32.totalorder %s21, 1
        %s169 = scalar_select %p168, %s21, 1
        %p170 = scmp.lt.s32.totalorder %s167, 1
        %s171 = scalar_select %p170, %s167, 1
        %s172 = smul.addr %s169, 2
        %s173 = sadd.s32 %s171, %s172
        %s174 = smul.addr %s173, 4
        %s175 = scalar_lea.vmem %s0, %s174
        %p176 = pneg %p52
        %p177 = pneg %p49
        %p178 = pneg %p73
        %p179 = pneg %p70
        %p180 = pneg %p94
        %p181 = pneg %p91
        %p182 = pneg %p122
        %p183 = pneg %p119
        %s184 = sand.u32 %s109, 1
        %s185 = scalar_lea.sflag [#allocation3], %s184
        %s186 = sand.u32 %s109, 1
        %s187 = smul.addr %s186, 512
        %s188 = scalar_lea.vmem [#allocation2], %s187
        %s189 = smul.u32 2, %s22
        %p190 = scmp.lt.s32.totalorder %s21, 1
        %s191 = scalar_select %p190, %s21, 1
        %p192 = scmp.lt.s32.totalorder %s189, 1
        %s193 = scalar_select %p192, %s189, 1
        %s194 = smul.addr %s191, 2
        %s195 = sadd.s32 %s193, %s194
        %s196 = smul.addr %s195, 4
        %s197 = scalar_lea.vmem %s0, %s196
        %s198 = smul.u32 2, %s22
        %s199 = smul.u32 32, %s22
        %v200 = vld [vmem:[%s197] sm:$0xff]
        %v201 = vld [vmem:[%s1] sm:$0xff]
        %v202 = vld [vmem:[%s2] sm:$0x3]
        %v204 = vlaneseq
        %v205 = vshrl.u32 %v204, 7
        %v206 = vsub.s32 0, %v205
        %v207 = vrot.slane %v202, %v206
        %v208 = vlaneseq
        %v209 = vshrl.u32 %v208, 7
        %v210 = vsub.s32 1, %v209
        %v211 = vrot.slane %v202, %v210
        %v215 = vcombine.high %v200, %v200
        %217 = vxpose.xlu0.b32.start [1/16] %v200, 128
        %218 = vxpose.xlu0.b32.cont [2/16] 0.0, 128
        %219 = vxpose.xlu0.b32.cont [3/16] 0.0, 128
        %220 = vxpose.xlu0.b32.cont [4/16] 0.0, 128
        %221 = vxpose.xlu0.b32.cont [5/16] 0.0, 128
        %222 = vxpose.xlu0.b32.cont [6/16] 0.0, 128
        %223 = vxpose.xlu0.b32.cont [7/16] 0.0, 128
        %224 = vxpose.xlu0.b32.cont [8/16] 0.0, 128
        %225 = vxpose.xlu0.b32.cont [9/16] 0.0, 128
        %226 = vxpose.xlu0.b32.cont [10/16] 0.0, 128
        %227 = vxpose.xlu0.b32.cont [11/16] 0.0, 128
        %228 = vxpose.xlu0.b32.cont [12/16] 0.0, 128
        %229 = vxpose.xlu0.b32.cont [13/16] 0.0, 128
        %230 = vxpose.xlu0.b32.cont [14/16] 0.0, 128
        %231 = vxpose.xlu0.b32.cont [15/16] 0.0, 128
        %232 = vxpose.xlu0.b32.end [16/16] 0.0, 128
        %v233 = vpop.trf.xlu0
        %v234 = vpop.trf.xlu0
        %v235 = vpop.trf.xlu0
        %v236 = vpop.trf.xlu0
        %v237 = vpop.trf.xlu0
        %v238 = vpop.trf.xlu0
        %v239 = vpop.trf.xlu0
        %v240 = vpop.trf.xlu0
        %v241 = vpop.trf.xlu0
        %v242 = vpop.trf.xlu0
        %v243 = vpop.trf.xlu0
        %v244 = vpop.trf.xlu0
        %v245 = vpop.trf.xlu0
        %v246 = vpop.trf.xlu0
        %v247 = vpop.trf.xlu0
        %v248 = vpop.trf.xlu0
        %249 = vxpose.xlu0.b32.start [1/16] %v215, 128
        %250 = vxpose.xlu0.b32.cont [2/16] 0.0, 128
        %251 = vxpose.xlu0.b32.cont [3/16] 0.0, 128
        %252 = vxpose.xlu0.b32.cont [4/16] 0.0, 128
        %253 = vxpose.xlu0.b32.cont [5/16] 0.0, 128
        %254 = vxpose.xlu0.b32.cont [6/16] 0.0, 128
        %255 = vxpose.xlu0.b32.cont [7/16] 0.0, 128
        %256 = vxpose.xlu0.b32.cont [8/16] 0.0, 128
        %257 = vxpose.xlu0.b32.cont [9/16] 0.0, 128
        %258 = vxpose.xlu0.b32.cont [10/16] 0.0, 128
        %259 = vxpose.xlu0.b32.cont [11/16] 0.0, 128
        %260 = vxpose.xlu0.b32.cont [12/16] 0.0, 128
        %261 = vxpose.xlu0.b32.cont [13/16] 0.0, 128
        %262 = vxpose.xlu0.b32.cont [14/16] 0.0, 128
        %263 = vxpose.xlu0.b32.cont [15/16] 0.0, 128
        %264 = vxpose.xlu0.b32.end [16/16] 0.0, 128
        %v265 = vpop.trf.xlu0
        %v266 = vpop.trf.xlu0
        %v267 = vpop.trf.xlu0
        %v268 = vpop.trf.xlu0
        %v269 = vpop.trf.xlu0
        %v270 = vpop.trf.xlu0
        %v271 = vpop.trf.xlu0
        %v272 = vpop.trf.xlu0
        %v273 = vpop.trf.xlu0
        %v274 = vpop.trf.xlu0
        %v275 = vpop.trf.xlu0
        %v276 = vpop.trf.xlu0
        %v277 = vpop.trf.xlu0
        %v278 = vpop.trf.xlu0
        %v279 = vpop.trf.xlu0
        %v280 = vpop.trf.xlu0
        %v282 = vcombine.high %v201, %v201
        %vm283 = vcmask 31744
        %v285 = vsel %vm283, %v233, 0
        %v288 = vsel %vm283, %v234, 0
        %v291 = vsel %vm283, %v235, 0
        %v294 = vsel %vm283, %v236, 0
        %v297 = vsel %vm283, %v237, 0
        %v300 = vsel %vm283, %v238, 0
        %v303 = vsel %vm283, %v239, 0
        %v306 = vsel %vm283, %v240, 0
        %v309 = vsel %vm283, %v241, 0
        %v312 = vsel %vm283, %v242, 0
        %v315 = vsel %vm283, %v243, 0
        %v318 = vsel %vm283, %v244, 0
        %v321 = vsel %vm283, %v245, 0
        %v324 = vsel %vm283, %v246, 0
        %v327 = vsel %vm283, %v247, 0
        %v330 = vsel %vm283, %v248, 0
        %v333 = vsel %vm283, %v265, 0
        %v336 = vsel %vm283, %v266, 0
        %v339 = vsel %vm283, %v267, 0
        %v342 = vsel %vm283, %v268, 0
        %v345 = vsel %vm283, %v269, 0
        %v348 = vsel %vm283, %v270, 0
        %v351 = vsel %vm283, %v271, 0
        %v354 = vsel %vm283, %v272, 0
        %v357 = vsel %vm283, %v273, 0
        %v360 = vsel %vm283, %v274, 0
        %v363 = vsel %vm283, %v275, 0
        %v366 = vsel %vm283, %v276, 0
        %v369 = vsel %vm283, %v277, 0
        %v372 = vsel %vm283, %v278, 0
        %v375 = vsel %vm283, %v279, 0
        %v378 = vsel %vm283, %v280, 0
        %vm380 = vcmask 1043456
        %v381 = vsel %vm380, %v201, 0
        %v383 = vsel %vm380, %v282, 0
        %385 = vmatprep.subr.mxu0 %v383
        %386 = vmatpush1.msra.mxu0 %v381
        %387 = vmatprep.subr.mxu0 0.0
        %388 = vmatpush1.msra.mxu0 0.0
        %389 = vmatprep.subr.mxu0 0.0
        %390 = vmatpush1.msra.mxu0 0.0
        %391 = vmatprep.subr.mxu0 0.0
        %392 = vmatpush1.msra.mxu0 0.0
        %393 = vmatprep.subr.mxu0 0.0
        %394 = vmatpush1.msra.mxu0 0.0
        %395 = vmatprep.subr.mxu0 0.0
        %396 = vmatpush1.msra.mxu0 0.0
        %397 = vmatprep.subr.mxu0 0.0
        %398 = vmatpush1.msra.mxu0 0.0
        %399 = vmatprep.subr.mxu0 0.0
        %400 = vmatpush1.msra.mxu0 0.0
        %401 = vmatprep.subr.mxu0 0.0
        %402 = vmatpush1.msra.mxu0 0.0
        %403 = vmatprep.subr.mxu0 0.0
        %404 = vmatpush1.msra.mxu0 0.0
        %405 = vmatprep.subr.mxu0 0.0
        %406 = vmatpush1.msra.mxu0 0.0
        %407 = vmatprep.subr.mxu0 0.0
        %408 = vmatpush1.msra.mxu0 0.0
        %409 = vmatprep.subr.mxu0 0.0
        %410 = vmatpush1.msra.mxu0 0.0
        %411 = vmatprep.subr.mxu0 0.0
        %412 = vmatpush1.msra.mxu0 0.0
        %413 = vmatprep.subr.mxu0 0.0
        %414 = vmatpush1.msra.mxu0 0.0
        %415 = vmatprep.subr.mxu0 0.0
        %416 = vmatpush1.msra.mxu0 0.0
        %417 = vmatprep.subr.mxu0 0.0
        %418 = vmatpush1.msra.mxu0 0.0
        %419 = vmatprep.subr.mxu0 0.0
        %420 = vmatpush1.msra.mxu0 0.0
        %421 = vmatprep.subr.mxu0 0.0
        %422 = vmatpush1.msra.mxu0 0.0
        %423 = vmatprep.subr.mxu0 0.0
        %424 = vmatpush1.msra.mxu0 0.0
        %425 = vmatprep.subr.mxu0 0.0
        %426 = vmatpush1.msra.mxu0 0.0
        %427 = vmatprep.subr.mxu0 0.0
        %428 = vmatpush1.msra.mxu0 0.0
        %429 = vmatprep.subr.mxu0 0.0
        %430 = vmatpush1.msra.mxu0 0.0
        %431 = vmatprep.subr.mxu0 0.0
        %432 = vmatpush1.msra.mxu0 0.0
        %433 = vmatprep.subr.mxu0 0.0
        %434 = vmatpush1.msra.mxu0 0.0
        %435 = vmatprep.subr.mxu0 0.0
        %436 = vmatpush1.msra.mxu0 0.0
        %437 = vmatprep.subr.mxu0 0.0
        %438 = vmatpush1.msra.mxu0 0.0
        %439 = vmatprep.subr.mxu0 0.0
        %440 = vmatpush1.msra.mxu0 0.0
        %441 = vmatprep.subr.mxu0 0.0
        %442 = vmatpush1.msra.mxu0 0.0
        %443 = vmatprep.subr.mxu0 0.0
        %444 = vmatpush1.msra.mxu0 0.0
        %445 = vmatprep.subr.mxu0 0.0
        %446 = vmatpush1.msra.mxu0 0.0
        %447 = vmatprep.subr.mxu0 0.0
        %448 = vmatpush1.msra.mxu0 0.0
        %449 = vmatprep.mubr.f32.mxu0 0.0
        %450 = vmatmul.mubr.f32.gmra.mrb[0].mxu0 %v285
        %v451 = vpop.f32.mrb[0].mxu0
        %v452 = vadd.f32 %v207, %v451
        %v453 = vpop.f32.mrb[0].mxu0
        %v454 = vadd.f32 %v211, %v453
        %455 = vmatprep.mubr.f32.mxu0 0.0
        %456 = vmatmul.mubr.f32.gmra.mrb[0].mxu0 %v288
        %v457 = vpop.f32.mrb[0].mxu0
        %v458 = vadd.f32 %v207, %v457
        %v459 = vpop.f32.mrb[0].mxu0
        %v460 = vadd.f32 %v211, %v459
        %461 = vmatprep.mubr.f32.mxu0 0.0
        %462 = vmatmul.mubr.f32.gmra.mrb[0].mxu0 %v291
        %v463 = vpop.f32.mrb[0].mxu0
        %v464 = vadd.f32 %v207, %v463
        %v465 = vpop.f32.mrb[0].mxu0
        %v466 = vadd.f32 %v211, %v465
        %467 = vmatprep.mubr.f32.mxu0 0.0
        %468 = vmatmul.mubr.f32.gmra.mrb[0].mxu0 %v294
        %v469 = vpop.f32.mrb[0].mxu0
        %v470 = vadd.f32 %v207, %v469
        %v471 = vpop.f32.mrb[0].mxu0
        %v472 = vadd.f32 %v211, %v471
        %473 = vmatprep.mubr.f32.mxu0 0.0
        %474 = vmatmul.mubr.f32.gmra.mrb[0].mxu0 %v297
        %v475 = vpop.f32.mrb[0].mxu0
        %v476 = vadd.f32 %v207, %v475
        %v477 = vpop.f32.mrb[0].mxu0
        %v478 = vadd.f32 %v211, %v477
        %479 = vmatprep.mubr.f32.mxu0 0.0
        %480 = vmatmul.mubr.f32.gmra.mrb[0].mxu0 %v300
        %v481 = vpop.f32.mrb[0].mxu0
        %v482 = vadd.f32 %v207, %v481
        %v483 = vpop.f32.mrb[0].mxu0
        %v484 = vadd.f32 %v211, %v483
        %485 = vmatprep.mubr.f32.mxu0 0.0
        %486 = vmatmul.mubr.f32.gmra.mrb[0].mxu0 %v303
        %v487 = vpop.f32.mrb[0].mxu0
        %v488 = vadd.f32 %v207, %v487
        %v489 = vpop.f32.mrb[0].mxu0
        %v490 = vadd.f32 %v211, %v489
        %491 = vmatprep.mubr.f32.mxu0 0.0
        %492 = vmatmul.mubr.f32.gmra.mrb[0].mxu0 %v306
        %v493 = vpop.f32.mrb[0].mxu0
        %v494 = vadd.f32 %v207, %v493
        %v495 = vpop.f32.mrb[0].mxu0
        %v496 = vadd.f32 %v211, %v495
        %497 = vmatprep.mubr.f32.mxu0 0.0
        %498 = vmatmul.mubr.f32.gmra.mrb[0].mxu0 %v309
        %v499 = vpop.f32.mrb[0].mxu0
        %v500 = vadd.f32 %v207, %v499
        %v501 = vpop.f32.mrb[0].mxu0
        %v502 = vadd.f32 %v211, %v501
        %503 = vmatprep.mubr.f32.mxu0 0.0
        %504 = vmatmul.mubr.f32.gmra.mrb[0].mxu0 %v312
        %v505 = vpop.f32.mrb[0].mxu0
        %v506 = vadd.f32 %v207, %v505
        %v507 = vpop.f32.mrb[0].mxu0
        %v508 = vadd.f32 %v211, %v507
        %509 = vmatprep.mubr.f32.mxu0 0.0
        %510 = vmatmul.mubr.f32.gmra.mrb[0].mxu0 %v315
        %v511 = vpop.f32.mrb[0].mxu0
        %v512 = vadd.f32 %v207, %v511
        %v513 = vpop.f32.mrb[0].mxu0
        %v514 = vadd.f32 %v211, %v513
        %515 = vmatprep.mubr.f32.mxu0 0.0
        %516 = vmatmul.mubr.f32.gmra.mrb[0].mxu0 %v318
        %v517 = vpop.f32.mrb[0].mxu0
        %v518 = vadd.f32 %v207, %v517
        %v519 = vpop.f32.mrb[0].mxu0
        %v520 = vadd.f32 %v211, %v519
        %521 = vmatprep.mubr.f32.mxu0 0.0
        %522 = vmatmul.mubr.f32.gmra.mrb[0].mxu0 %v321
        %v523 = vpop.f32.mrb[0].mxu0
        %v524 = vadd.f32 %v207, %v523
        %v525 = vpop.f32.mrb[0].mxu0
        %v526 = vadd.f32 %v211, %v525
        %527 = vmatprep.mubr.f32.mxu0 0.0
        %528 = vmatmul.mubr.f32.gmra.mrb[0].mxu0 %v324
        %v529 = vpop.f32.mrb[0].mxu0
        %v530 = vadd.f32 %v207, %v529
        %v531 = vpop.f32.mrb[0].mxu0
        %v532 = vadd.f32 %v211, %v531
        %533 = vmatprep.mubr.f32.mxu0 0.0
        %534 = vmatmul.mubr.f32.gmra.mrb[0].mxu0 %v327
        %v535 = vpop.f32.mrb[0].mxu0
        %v536 = vadd.f32 %v207, %v535
        %v537 = vpop.f32.mrb[0].mxu0
        %v538 = vadd.f32 %v211, %v537
        %539 = vmatprep.mubr.f32.mxu0 0.0
        %540 = vmatmul.mubr.f32.gmra.mrb[0].mxu0 %v330
        %v541 = vpop.f32.mrb[0].mxu0
        %v542 = vadd.f32 %v207, %v541
        %v543 = vpop.f32.mrb[0].mxu0
        %v544 = vadd.f32 %v211, %v543
        %545 = vmatprep.mubr.f32.mxu0 0.0
        %546 = vmatmul.mubr.f32.gmra.mrb[0].mxu0 %v333
        %v547 = vpop.f32.mrb[0].mxu0
        %v548 = vadd.f32 %v207, %v547
        %v549 = vpop.f32.mrb[0].mxu0
        %v550 = vadd.f32 %v211, %v549
        %551 = vmatprep.mubr.f32.mxu0 0.0
        %552 = vmatmul.mubr.f32.gmra.mrb[0].mxu0 %v336
        %v553 = vpop.f32.mrb[0].mxu0
        %v554 = vadd.f32 %v207, %v553
        %v555 = vpop.f32.mrb[0].mxu0
        %v556 = vadd.f32 %v211, %v555
        %557 = vmatprep.mubr.f32.mxu0 0.0
        %558 = vmatmul.mubr.f32.gmra.mrb[0].mxu0 %v339
        %v559 = vpop.f32.mrb[0].mxu0
        %v560 = vadd.f32 %v207, %v559
        %v561 = vpop.f32.mrb[0].mxu0
        %v562 = vadd.f32 %v211, %v561
        %563 = vmatprep.mubr.f32.mxu0 0.0
        %564 = vmatmul.mubr.f32.gmra.mrb[0].mxu0 %v342
        %v565 = vpop.f32.mrb[0].mxu0
        %v566 = vadd.f32 %v207, %v565
        %v567 = vpop.f32.mrb[0].mxu0
        %v568 = vadd.f32 %v211, %v567
        %569 = vmatprep.mubr.f32.mxu0 0.0
        %570 = vmatmul.mubr.f32.gmra.mrb[0].mxu0 %v345
        %v571 = vpop.f32.mrb[0].mxu0
        %v572 = vadd.f32 %v207, %v571
        %v573 = vpop.f32.mrb[0].mxu0
        %v574 = vadd.f32 %v211, %v573
        %575 = vmatprep.mubr.f32.mxu0 0.0
        %576 = vmatmul.mubr.f32.gmra.mrb[0].mxu0 %v348
        %v577 = vpop.f32.mrb[0].mxu0
        %v578 = vadd.f32 %v207, %v577
        %v579 = vpop.f32.mrb[0].mxu0
        %v580 = vadd.f32 %v211, %v579
        %581 = vmatprep.mubr.f32.mxu0 0.0
        %582 = vmatmul.mubr.f32.gmra.mrb[0].mxu0 %v351
        %v583 = vpop.f32.mrb[0].mxu0
        %v584 = vadd.f32 %v207, %v583
        %v585 = vpop.f32.mrb[0].mxu0
        %v586 = vadd.f32 %v211, %v585
        %587 = vmatprep.mubr.f32.mxu0 0.0
        %588 = vmatmul.mubr.f32.gmra.mrb[0].mxu0 %v354
        %v589 = vpop.f32.mrb[0].mxu0
        %v590 = vadd.f32 %v207, %v589
        %v591 = vpop.f32.mrb[0].mxu0
        %v592 = vadd.f32 %v211, %v591
        %593 = vmatprep.mubr.f32.mxu0 0.0
        %594 = vmatmul.mubr.f32.gmra.mrb[0].mxu0 %v357
        %v595 = vpop.f32.mrb[0].mxu0
        %v596 = vadd.f32 %v207, %v595
        %v597 = vpop.f32.mrb[0].mxu0
        %v598 = vadd.f32 %v211, %v597
        %599 = vmatprep.mubr.f32.mxu0 0.0
        %600 = vmatmul.mubr.f32.gmra.mrb[0].mxu0 %v360
        %v601 = vpop.f32.mrb[0].mxu0
        %v602 = vadd.f32 %v207, %v601
        %v603 = vpop.f32.mrb[0].mxu0
        %v604 = vadd.f32 %v211, %v603
        %605 = vmatprep.mubr.f32.mxu0 0.0
        %606 = vmatmul.mubr.f32.gmra.mrb[0].mxu0 %v363
        %v607 = vpop.f32.mrb[0].mxu0
        %v608 = vadd.f32 %v207, %v607
        %v609 = vpop.f32.mrb[0].mxu0
        %v610 = vadd.f32 %v211, %v609
        %611 = vmatprep.mubr.f32.mxu0 0.0
        %612 = vmatmul.mubr.f32.gmra.mrb[0].mxu0 %v366
        %v613 = vpop.f32.mrb[0].mxu0
        %v614 = vadd.f32 %v207, %v613
        %v615 = vpop.f32.mrb[0].mxu0
        %v616 = vadd.f32 %v211, %v615
        %617 = vmatprep.mubr.f32.mxu0 0.0
        %618 = vmatmul.mubr.f32.gmra.mrb[0].mxu0 %v369
        %v619 = vpop.f32.mrb[0].mxu0
        %v620 = vadd.f32 %v207, %v619
        %v621 = vpop.f32.mrb[0].mxu0
        %v622 = vadd.f32 %v211, %v621
        %623 = vmatprep.mubr.f32.mxu0 0.0
        %624 = vmatmul.mubr.f32.gmra.mrb[0].mxu0 %v372
        %v625 = vpop.f32.mrb[0].mxu0
        %v626 = vadd.f32 %v207, %v625
        %v627 = vpop.f32.mrb[0].mxu0
        %v628 = vadd.f32 %v211, %v627
        %629 = vmatprep.mubr.f32.mxu0 0.0
        %630 = vmatmul.mubr.f32.gmra.mrb[0].mxu0 %v375
        %v631 = vpop.f32.mrb[0].mxu0
        %v632 = vadd.f32 %v207, %v631
        %v633 = vpop.f32.mrb[0].mxu0
        %v634 = vadd.f32 %v211, %v633
        %635 = vmatprep.mubr.f32.mxu0 0.0
        %636 = vmatmul.mubr.f32.gmra.mrb[0].mxu0 %v378
        %v637 = vpop.f32.mrb[0].mxu0
        %v638 = vadd.f32 %v207, %v637
        %v639 = vpop.f32.mrb[0].mxu0
        %v640 = vadd.f32 %v211, %v639
        %641 = vdwg.mxu0
        %642 = vst [vmem:[%s188] sm:$0xff] %v452
        %643 = vst [vmem:[%s188 + $0x8] sm:$0xff] %v454
        %644 = vst [vmem:[%s188 + $0x10] sm:$0xff] %v458
        %645 = vst [vmem:[%s188 + $0x18] sm:$0xff] %v460
        %646 = vst [vmem:[%s188 + $0x20] sm:$0xff] %v464
        %647 = vst [vmem:[%s188 + $0x28] sm:$0xff] %v466
        %648 = vst [vmem:[%s188 + $0x30] sm:$0xff] %v470
        %649 = vst [vmem:[%s188 + $0x38] sm:$0xff] %v472
        %650 = vst [vmem:[%s188 + $0x40] sm:$0xff] %v476
        %651 = vst [vmem:[%s188 + $0x48] sm:$0xff] %v478
        %652 = vst [vmem:[%s188 + $0x50] sm:$0xff] %v482
        %653 = vst [vmem:[%s188 + $0x58] sm:$0xff] %v484
        %654 = vst [vmem:[%s188 + $0x60] sm:$0xff] %v488
        %655 = vst [vmem:[%s188 + $0x68] sm:$0xff] %v490
        %656 = vst [vmem:[%s188 + $0x70] sm:$0xff] %v494
        %657 = vst [vmem:[%s188 + $0x78] sm:$0xff] %v496
        %658 = vst [vmem:[%s188 + $0x80] sm:$0xff] %v500
        %659 = vst [vmem:[%s188 + $0x88] sm:$0xff] %v502
        %660 = vst [vmem:[%s188 + $0x90] sm:$0xff] %v506
        %661 = vst [vmem:[%s188 + $0x98] sm:$0xff] %v508
        %662 = vst [vmem:[%s188 + $0xa0] sm:$0xff] %v512
        %663 = vst [vmem:[%s188 + $0xa8] sm:$0xff] %v514
        %664 = vst [vmem:[%s188 + $0xb0] sm:$0xff] %v518
        %665 = vst [vmem:[%s188 + $0xb8] sm:$0xff] %v520
        %666 = vst [vmem:[%s188 + $0xc0] sm:$0xff] %v524
        %667 = vst [vmem:[%s188 + $0xc8] sm:$0xff] %v526
        %668 = vst [vmem:[%s188 + $0xd0] sm:$0xff] %v530
        %669 = vst [vmem:[%s188 + $0xd8] sm:$0xff] %v532
        %670 = vst [vmem:[%s188 + $0xe0] sm:$0xff] %v536
        %671 = vst [vmem:[%s188 + $0xe8] sm:$0xff] %v538
        %672 = vst [vmem:[%s188 + $0xf0] sm:$0xff] %v542
        %673 = vst [vmem:[%s188 + $0xf8] sm:$0xff] %v544
        %674 = vst [vmem:[%s188 + $0x100] sm:$0xff] %v548
        %675 = vst [vmem:[%s188 + $0x108] sm:$0xff] %v550
        %676 = vst [vmem:[%s188 + $0x110] sm:$0xff] %v554
        %677 = vst [vmem:[%s188 + $0x118] sm:$0xff] %v556
        %678 = vst [vmem:[%s188 + $0x120] sm:$0xff] %v560
        %679 = vst [vmem:[%s188 + $0x128] sm:$0xff] %v562
        %680 = vst [vmem:[%s188 + $0x130] sm:$0xff] %v566
        %681 = vst [vmem:[%s188 + $0x138] sm:$0xff] %v568
        %682 = vst [vmem:[%s188 + $0x140] sm:$0xff] %v572
        %683 = vst [vmem:[%s188 + $0x148] sm:$0xff] %v574
        %684 = vst [vmem:[%s188 + $0x150] sm:$0xff] %v578
        %685 = vst [vmem:[%s188 + $0x158] sm:$0xff] %v580
        %686 = vst [vmem:[%s188 + $0x160] sm:$0xff] %v584
        %687 = vst [vmem:[%s188 + $0x168] sm:$0xff] %v586
        %688 = vst [vmem:[%s188 + $0x170] sm:$0xff] %v590
        %689 = vst [vmem:[%s188 + $0x178] sm:$0xff] %v592
        %690 = vst [vmem:[%s188 + $0x180] sm:$0xff] %v596
        %691 = vst [vmem:[%s188 + $0x188] sm:$0xff] %v598
        %692 = vst [vmem:[%s188 + $0x190] sm:$0xff] %v602
        %693 = vst [vmem:[%s188 + $0x198] sm:$0xff] %v604
        %694 = vst [vmem:[%s188 + $0x1a0] sm:$0xff] %v608
        %695 = vst [vmem:[%s188 + $0x1a8] sm:$0xff] %v610
        %696 = vst [vmem:[%s188 + $0x1b0] sm:$0xff] %v614
        %697 = vst [vmem:[%s188 + $0x1b8] sm:$0xff] %v616
        %698 = vst [vmem:[%s188 + $0x1c0] sm:$0xff] %v620
        %699 = vst [vmem:[%s188 + $0x1c8] sm:$0xff] %v622
        %700 = vst [vmem:[%s188 + $0x1d0] sm:$0xff] %v626
        %701 = vst [vmem:[%s188 + $0x1d8] sm:$0xff] %v628
        %702 = vst [vmem:[%s188 + $0x1e0] sm:$0xff] %v632
        %703 = vst [vmem:[%s188 + $0x1e8] sm:$0xff] %v634
        %704 = vst [vmem:[%s188 + $0x1f0] sm:$0xff] %v638
        %705 = vst [vmem:[%s188 + $0x1f8] sm:$0xff] %v640
        %s706 = sand.u32 %s109, 1
        %s707 = scalar_lea.sflag [#allocation3], %s706
        %s708 = sand.u32 %s109, 1
        %s709 = smul.addr %s708, 512
        %s710 = scalar_lea.vmem [#allocation2], %s709
        // Predicated region
        $region33: #{segformer_mlp.1} parent=31 // pred_check
          %p711 = pneg %p119
        $region34: #{segformer_mlp.1} parent=31 // pred_check_branch
          %713 = sbr.rel (%p711) target = $region36
        $region35: #{segformer_mlp.1} parent=31 // pred_region
          %s714 = smul.u32 32, %s22
          %s716 = ssub.s32 8192, 8192
          %717 = vsyncadd %s707, %s716
          %s718 = smul.addr %s714, 2
          %s719 = smul.addr %s21, 64
          %s720 = sadd.s32 %s718, %s719
          %s721 = smul.addr %s720, 128
          %s722 = scalar_lea.hbm %s3, %s721
          %s723 = sshll.u32 %s710, 4
          %s724 = int_to_ptr.vmem [resolvable:$true] %s723
          %729 = dma.vmem_to_hbm [thread:$0]  %s724, 8192, %s722, %s707, 256, 256, 16
        $region36: #{segformer_mlp.1} parent=31 // pred_fallthru
          _
      $region32: #{segformer_mlp.1} parent=5 // pred_fallthru
        _
      %p730 = scmp.le.s32.totalorder 2, %s12
      // Predicated region
      $region37: #{segformer_mlp.1} parent=5 // pred_check
        %p731 = pneg %p730
      $region38: #{segformer_mlp.1} parent=5 // pred_check_branch
        %733 = sbr.rel (%p731) target = $region40
      $region39: #{segformer_mlp.1} parent=5 // pred_region
        %s734 = ssub.s32 %s12, 2
        // Predicated region
        $region41: #{segformer_mlp.1} parent=39 // pred_check
          %p735 = pneg %p125
        $region42: #{segformer_mlp.1} parent=39 // pred_check_branch
          %737 = sbr.rel (%p735) target = $region44
        $region43: #{segformer_mlp.1} parent=39 // pred_region
          %s738 = sand.u32 %s110, 1
          %s739 = scalar_lea.sflag [#allocation3], %s738
          %s740 = sand.u32 %s110, 1
          %s741 = smul.addr %s740, 512
          %s742 = scalar_lea.vmem [#allocation2], %s741
          %743 = dma.done %s739, 8192
        $region44: #{segformer_mlp.1} parent=39 // pred_fallthru
          _
      $region40: #{segformer_mlp.1} parent=5 // pred_fallthru
        _
    $region6: #{segformer_mlp.1} parent=1 // loop_footer
      %s16 = sadd.s32 1, %s12
    $region7: #{segformer_mlp.1} parent=1 // loop_footer_branch
      %11 = sbr.rel target = $region3
    $region8: #{segformer_mlp.1} parent=1 // loop_exit
      _
    %744 = vsyncpa [#allocation3], 1
    %s745 = scalar_lea.sflag [#allocation3], 1
    %746 = vsyncpa %s745, 1

</llo_original>
